<compile_context>
chip_gen: v6e
topology: v6e:2x2x1
jax: 0.10.0
libtpu: 0.0.40
codegen_flags: <defaults>
</compile_context>

<pallas_src>
import math
from typing import NamedTuple

import jax
import jax.numpy as jnp
from jax import lax
from jax.experimental import pallas as pl
from jax.experimental.pallas import tpu as pltpu


# Contract last dim of x (num_in slice) with last dim of W (num_out, num_in).
_DIMS = (((1,), (1,)), ((), ()))


# --------------------------------------------------------------------------- #
# Kernels
# --------------------------------------------------------------------------- #
def _noisy_linear_kernel(x_ref, mu_w_ref, sig_w_ref, b_eff_ref, f_i_ref, f_j_ref,
                         o_ref, sig_acc_ref):
    """Training path: y = x @ mu^T + f_j * ((x*f_i) @ sigma^T) + b_eff."""
    k = pl.program_id(2)

    @pl.when(k == 0)
    def _():
        o_ref[...] = jnp.zeros_like(o_ref)
        sig_acc_ref[...] = jnp.zeros_like(sig_acc_ref)

    x = x_ref[...]                                           # (tb, tk)
    # mu branch accumulates directly into the resident f32 output block.
    o_ref[...] += lax.dot_general(x, mu_w_ref[...], _DIMS,
                                  preferred_element_type=jnp.float32)
    # sigma branch: column-scale x by f_i, accumulate separately so the f_j
    # row scale is applied once in the epilogue rather than every K step.
    x_noisy = x * f_i_ref[...].astype(x.dtype)
    sig_acc_ref[...] += lax.dot_general(x_noisy, sig_w_ref[...], _DIMS,
                                        preferred_element_type=jnp.float32)

    @pl.when(k == pl.num_programs(2) - 1)
    def _():
        o_ref[...] += f_j_ref[...] * sig_acc_ref[...] + b_eff_ref[...]


def _plain_linear_kernel(x_ref, mu_w_ref, mu_b_ref, o_ref):
    """Eval path: weight = mu_weight, bias = mu_bias (noise branch skipped)."""
    k = pl.program_id(2)

    @pl.when(k == 0)
    def _():
        o_ref[...] = jnp.zeros_like(o_ref)

    o_ref[...] += lax.dot_general(x_ref[...], mu_w_ref[...], _DIMS,
                                  preferred_element_type=jnp.float32)

    @pl.when(k == pl.num_programs(2) - 1)
    def _():
        o_ref[...] += mu_b_ref[...]


# --------------------------------------------------------------------------- #
# Tiling / padding helpers
# --------------------------------------------------------------------------- #
def _round_up(x, m):
    return ((x + m - 1) // m) * m


def _pick_tile_lane(padded_dim, cap):
    """Largest multiple of 128 dividing padded_dim and <= cap (padded_dim % 128 == 0)."""
    m = padded_dim // 128
    for d in range(min(m, max(cap // 128, 1)), 0, -1):
        if m % d == 0:
            return 128 * d
    return 128


def _pick_tile_batch(padded_b, cap=512):
    """Largest multiple of 8 dividing padded_b and <= cap (padded_b % 8 == 0)."""
    m = padded_b // 8
    for d in range(min(m, max(cap // 8, 1)), 0, -1):
        if m % d == 0:
            return 8 * d
    return 8


def _vmem_limit_bytes():
    """Device-aware scoped-VMEM budget: 96 MiB on 128-MiB chips, 48 MiB on v7x."""
    try:
        cap = pltpu.get_tpu_info().vmem_capacity_bytes
    except Exception:
        cap = 64 * 1024 * 1024
    return min(int(cap * 3 // 4), 96 * 1024 * 1024)


# --------------------------------------------------------------------------- #
# Persistent parameter preparation (cast + pad ONCE, not per forward call)
# --------------------------------------------------------------------------- #
class NoisyLinearParams(NamedTuple):
    mu_w: jax.Array      # (Np, Kp) compute_dtype (bf16 by default), padded
    sig_w: jax.Array     # (Np, Kp) compute_dtype, padded
    mu_b: jax.Array      # (1, Np)  f32, padded
    sig_b: jax.Array     # (1, Np)  f32, padded
    num_in: int
    num_out: int
    tn: int
    tk: int


def prepare_params(mu_weight, mu_bias, sigma_weight, sigma_bias,
                   compute_dtype=jnp.bfloat16):
    """Pad parameters to (multiple-of-128) lane-friendly shapes and store them
    persistently in the MXU streaming dtype (bf16 default, f32 supported).
    Accumulation and output are always f32."""
    num_out, num_in = mu_weight.shape
    Kp = _round_up(num_in, 128)
    Np = _round_up(num_out, 128)

    itemsize = jnp.dtype(compute_dtype).itemsize
    tk_cap = 2048 if itemsize <= 2 else 1024          # fits 48 MiB scoped VMEM on v7x
    tn_cap = 1024
    if Np >= 256:
        # Guarantee >= 2 tiles on the parallel N axis so both v7x TensorCores work.
        tn_cap = min(tn_cap, Np // 2)

    tk = _pick_tile_lane(Kp, tk_cap)
    tn = _pick_tile_lane(Np, tn_cap)

    def pad_w(w):
        w = jnp.asarray(w, compute_dtype)
        return jnp.pad(w, ((0, Np - num_out), (0, Kp - num_in)))

    def pad_b(b):
        b = jnp.asarray(b, jnp.float32)
        return jnp.pad(b, (0, Np - num_out)).reshape(1, Np)

    return NoisyLinearParams(pad_w(mu_weight), pad_w(sigma_weight),
                             pad_b(mu_bias), pad_b(sigma_bias),
                             num_in, num_out, tn, tk)


# --------------------------------------------------------------------------- #
# Forward
# --------------------------------------------------------------------------- #
def factorized_noisy_linear(x, params: NoisyLinearParams,
                            eps_i_raw, eps_j_raw, is_training=True):
    """Forward pass of FactorizedNoisyLinear.

    x         : (B, num_in)
    params    : prepared (padded / cast-once) parameters
    eps_i_raw : (num_in,)  raw N(0,1) noise (the reset_noise() draw)
    eps_j_raw : (num_out,) raw N(0,1) noise
    """
    B, num_in = x.shape
    assert num_in == params.num_in, "x feature dim mismatch"
    num_out = params.num_out
    Np, Kp = params.mu_w.shape
    tn, tk = params.tn, params.tk
    compute_dtype = params.mu_w.dtype

    Bp = _round_up(max(B, 8), 8)
    tb = _pick_tile_batch(Bp)
    x_p = jnp.pad(x.astype(compute_dtype), ((0, Bp - B), (0, Kp - num_in)))

    grid = (Bp // tb, Np // tn, Kp // tk)

    x_spec = pl.BlockSpec((tb, tk), lambda b, j, k: (b, k))
    w_spec = pl.BlockSpec((tn, tk), lambda b, j, k: (j, k))
    row_n_spec = pl.BlockSpec((1, tn), lambda b, j, k: (0, j))
    row_k_spec = pl.BlockSpec((1, tk), lambda b, j, k: (0, k))
    out_spec = pl.BlockSpec((tb, tn), lambda b, j, k: (b, j))
    out_shape = jax.ShapeDtypeStruct((Bp, Np), jnp.float32)

    compiler_params = pltpu.CompilerParams(
        dimension_semantics=("parallel", "parallel", "arbitrary"),
        vmem_limit_bytes=_vmem_limit_bytes())

    if not is_training:
        y = pl.pallas_call(
            _plain_linear_kernel, out_shape=out_shape,
            grid_spec=pltpu.PrefetchScalarGridSpec(
                num_scalar_prefetch=0, grid=grid,
                in_specs=[x_spec, w_spec, row_n_spec],
                out_specs=out_spec),
            compiler_params=compiler_params,
        )(x_p, params.mu_w, params.mu_b)
        return y[:B, :num_out]

    # Factorized noise shaping f(e) = sign(e) * sqrt(|e|), once, O(K + N).
    f = lambda e: jnp.sign(e) * jnp.sqrt(jnp.abs(e))
    f_i = jnp.pad(f(jnp.asarray(eps_i_raw, jnp.float32)),
                  (0, Kp - num_in)).reshape(1, Kp)
    f_j = jnp.pad(f(jnp.asarray(eps_j_raw, jnp.float32)),
                  (0, Np - num_out)).reshape(1, Np)
    b_eff = params.mu_b + params.sig_b * f_j           # folded bias, O(N) in wrapper

    y = pl.pallas_call(
        _noisy_linear_kernel, out_shape=out_shape,
        grid_spec=pltpu.PrefetchScalarGridSpec(
            num_scalar_prefetch=0, grid=grid,
            in_specs=[x_spec, w_spec, w_spec, row_n_spec, row_k_spec, row_n_spec],
            out_specs=out_spec,
            scratch_shapes=[pltpu.VMEM((tb, tn), jnp.float32)]),
        compiler_params=compiler_params,
    )(x_p, params.mu_w, params.sig_w, b_eff, f_i, f_j)
    return y[:B, :num_out]


# --------------------------------------------------------------------------- #
# Init + pure-JAX reference
# --------------------------------------------------------------------------- #
def init_params(key, num_in, num_out):
    """Deterministic parameter init matching reset_parameters()."""
    std = 1.0 / math.sqrt(num_in)
    k_mw, k_mb = jax.random.split(key)
    mu_weight = jax.random.uniform(k_mw, (num_out, num_in), jnp.float32, -std, std)
    mu_bias = jax.random.uniform(k_mb, (num_out,), jnp.float32, -std, std)
    sigma_weight = jnp.full((num_out, num_in), 0.5 / math.sqrt(num_in), jnp.float32)
    sigma_bias = jnp.full((num_out,), 0.5 / math.sqrt(num_in), jnp.float32)
    return mu_weight, mu_bias, sigma_weight, sigma_bias


def reference_forward(x, mu_w, mu_b, sig_w, sig_b, eps_i_raw, eps_j_raw,
                      is_training=True):
    """Pure-JAX reference mirroring the PyTorch forward."""
    if not is_training:
        return x @ mu_w.T + mu_b
    f = lambda e: jnp.sign(e) * jnp.sqrt(jnp.abs(e))
    e_i, e_j = f(eps_i_raw), f(eps_j_raw)
    eps_w = jnp.outer(e_j, e_i)                 # epsilon_j.ger(epsilon_i)
    w = mu_w + sig_w * eps_w
    b = mu_b + sig_b * e_j
    return x @ w.T + b


# --------------------------------------------------------------------------- #
if __name__ == "__main__":
    # Small, deliberately non-128-multiple shapes to exercise the padding path.
    B, NUM_IN, NUM_OUT = 6, 48, 32

    key = jax.random.PRNGKey(0)
    k_x, k_p, k_ei, k_ej = jax.random.split(key, 4)

    x = jax.random.normal(k_x, (B, NUM_IN), jnp.float32)
    mu_w, mu_b, sig_w, sig_b = init_params(k_p, NUM_IN, NUM_OUT)

    # reset_noise(): raw N(0,1) draws (deterministic here in place of torch.randn)
    # TODO(synk): the per-forward torch.randn draw lives in the wrapper/caller
    # (jax.random), not inside the kernel.
    eps_i_raw = jax.random.normal(k_ei, (NUM_IN,), jnp.float32)
    eps_j_raw = jax.random.normal(k_ej, (NUM_OUT,), jnp.float32)

    y_ref = reference_forward(x, mu_w, mu_b, sig_w, sig_b, eps_i_raw, eps_j_raw)
    y_eval_ref = reference_forward(x, mu_w, mu_b, sig_w, sig_b,
                                   eps_i_raw, eps_j_raw, is_training=False)

    # --- bf16 persistent weight storage (default) ---------------------------
    params_bf16 = prepare_params(mu_w, mu_b, sig_w, sig_b)   # bf16 default
    y_bf16 = jax.block_until_ready(
        factorized_noisy_linear(x, params_bf16, eps_i_raw, eps_j_raw,
                                is_training=True))
    assert y_bf16.shape == (B, NUM_OUT)
    assert jnp.allclose(y_bf16, y_ref, atol=5e-2, rtol=5e-2), "train/bf16 mismatch"

    y_eval = jax.block_until_ready(
        factorized_noisy_linear(x, params_bf16, eps_i_raw, eps_j_raw,
                                is_training=False))
    assert jnp.allclose(y_eval, y_eval_ref, atol=5e-2, rtol=5e-2), "eval/bf16 mismatch"

    # --- f32 streaming (tight tolerance check) -------------------------------
    params_f32 = prepare_params(mu_w, mu_b, sig_w, sig_b,
                                compute_dtype=jnp.float32)
    y_f32 = jax.block_until_ready(
        factorized_noisy_linear(x, params_f32, eps_i_raw, eps_j_raw,
                                is_training=True))
    assert jnp.allclose(y_f32, y_ref, atol=1e-5, rtol=1e-4), "train/f32 mismatch"

    y_eval_f32 = jax.block_until_ready(
        factorized_noisy_linear(x, params_f32, eps_i_raw, eps_j_raw,
                                is_training=False))
    assert jnp.allclose(y_eval_f32, y_eval_ref, atol=1e-5, rtol=1e-4), "eval/f32 mismatch"

    print("KERNEL_OK")
</pallas_src>

<mosaic_0001>
module attributes {stable_mosaic.version = 11 : i64} {
  func.func @_noisy_linear_kernel(%arg0: i32, %arg1: i32, %arg2: i32, %arg3: memref<8x128xbf16, #tpu.memory_space<vmem>>, %arg4: memref<128x128xbf16, #tpu.memory_space<vmem>>, %arg5: memref<128x128xbf16, #tpu.memory_space<vmem>>, %arg6: memref<1x128xf32, #tpu.memory_space<vmem>>, %arg7: memref<1x128xf32, #tpu.memory_space<vmem>>, %arg8: memref<1x128xf32, #tpu.memory_space<vmem>>, %arg9: memref<8x128xf32, #tpu.memory_space<vmem>>, %arg10: memref<8x128xf32, #tpu.memory_space<vmem>>) attributes {dimension_semantics = [#tpu.dimension_semantics<parallel>, #tpu.dimension_semantics<parallel>, #tpu.dimension_semantics<arbitrary>], iteration_bounds = array<i64: 1, 1, 1>, scalar_prefetch = 0 : i64, scratch_operands = 1 : i64, tpu.core_type = #tpu.core_type<tc>, window_params = [{transform_indices = @transform_0, window_bounds = array<i64: 8, 128>}, {transform_indices = @transform_1, window_bounds = array<i64: 128, 128>}, {transform_indices = @transform_2, window_bounds = array<i64: 128, 128>}, {transform_indices = @transform_3, window_bounds = array<i64: 1, 128>}, {transform_indices = @transform_4, window_bounds = array<i64: 1, 128>}, {transform_indices = @transform_5, window_bounds = array<i64: 1, 128>}, {transform_indices = @transform_6, window_bounds = array<i64: 8, 128>}]} {
    %c0_i32 = arith.constant 0 : i32
    %0 = arith.cmpi eq, %arg2, %c0_i32 : i32
    %1 = arith.extui %0 : i1 to i32
    %c0_i32_0 = arith.constant 0 : i32
    %2 = arith.cmpi ne, %1, %c0_i32_0 : i32
    scf.if %2 {
      %cst_19 = arith.constant 0.000000e+00 : f32
      %21 = vector.broadcast %cst_19 : f32 to vector<8x128xf32>
      %c0_20 = arith.constant 0 : index
      %c0_21 = arith.constant 0 : index
      %22 = vector.load %arg9[%c0_20, %c0_21] : memref<8x128xf32, #tpu.memory_space<vmem>>, vector<8x128xf32>
      tpu.vector_store %arg9[%c0_20, %c0_21], %21 {strides = array<i32>} : memref<8x128xf32, #tpu.memory_space<vmem>>, vector<8x128xf32>,
      %cst_22 = arith.constant 0.000000e+00 : f32
      %23 = vector.broadcast %cst_22 : f32 to vector<8x128xf32>
      %c0_23 = arith.constant 0 : index
      %c0_24 = arith.constant 0 : index
      %24 = vector.load %arg10[%c0_23, %c0_24] : memref<8x128xf32, #tpu.memory_space<vmem>>, vector<8x128xf32>
      tpu.vector_store %arg10[%c0_23, %c0_24], %23 {strides = array<i32>} : memref<8x128xf32, #tpu.memory_space<vmem>>, vector<8x128xf32>,
    } else {
    }
    %c0 = arith.constant 0 : index
    %c0_1 = arith.constant 0 : index
    %3 = vector.load %arg3[%c0, %c0_1] : memref<8x128xbf16, #tpu.memory_space<vmem>>, vector<8x128xbf16>
    %c0_2 = arith.constant 0 : index
    %c0_3 = arith.constant 0 : index
    %4 = vector.load %arg9[%c0_2, %c0_3] : memref<8x128xf32, #tpu.memory_space<vmem>>, vector<8x128xf32>
    %c0_4 = arith.constant 0 : index
    %c0_5 = arith.constant 0 : index
    %5 = vector.load %arg4[%c0_4, %c0_5] : memref<128x128xbf16, #tpu.memory_space<vmem>>, vector<128x128xbf16>
    %cst = arith.constant dense<0.000000e+00> : vector<8x128xf32>
    %6 = tpu.matmul %3, %5, %cst {dimension_numbers = #tpu.dot_dimension_numbers<[1], [1], [0], [0], [0, 0, 1, 0], [], []>} : vector<8x128xbf16>, vector<128x128xbf16>, vector<8x128xf32> -> vector<8x128xf32>
    %7 = arith.addf %4, %6 : vector<8x128xf32>
    %c0_6 = arith.constant 0 : index
    %c0_7 = arith.constant 0 : index
    %8 = vector.load %arg9[%c0_6, %c0_7] : memref<8x128xf32, #tpu.memory_space<vmem>>, vector<8x128xf32>
    tpu.vector_store %arg9[%c0_6, %c0_7], %7 {strides = array<i32>} : memref<8x128xf32, #tpu.memory_space<vmem>>, vector<8x128xf32>,
    %c0_8 = arith.constant 0 : index
    %c0_9 = arith.constant 0 : index
    %9 = vector.load %arg7[%c0_8, %c0_9] : memref<1x128xf32, #tpu.memory_space<vmem>>, vector<1x128xf32>
    %10 = arith.truncf %9 : vector<1x128xf32> to vector<1x128xbf16>
    %11 = vector.broadcast %10 : vector<1x128xbf16> to vector<8x128xbf16>
    %12 = arith.mulf %3, %11 : vector<8x128xbf16>
    %c0_10 = arith.constant 0 : index
    %c0_11 = arith.constant 0 : index
    %13 = vector.load %arg10[%c0_10, %c0_11] : memref<8x128xf32, #tpu.memory_space<vmem>>, vector<8x128xf32>
    %c0_12 = arith.constant 0 : index
    %c0_13 = arith.constant 0 : index
    %14 = vector.load %arg5[%c0_12, %c0_13] : memref<128x128xbf16, #tpu.memory_space<vmem>>, vector<128x128xbf16>
    %cst_14 = arith.constant dense<0.000000e+00> : vector<8x128xf32>
    %15 = tpu.matmul %12, %14, %cst_14 {dimension_numbers = #tpu.dot_dimension_numbers<[1], [1], [0], [0], [0, 0, 1, 0], [], []>} : vector<8x128xbf16>, vector<128x128xbf16>, vector<8x128xf32> -> vector<8x128xf32>
    %16 = arith.addf %13, %15 : vector<8x128xf32>
    %c0_15 = arith.constant 0 : index
    %c0_16 = arith.constant 0 : index
    %17 = vector.load %arg10[%c0_15, %c0_16] : memref<8x128xf32, #tpu.memory_space<vmem>>, vector<8x128xf32>
    tpu.vector_store %arg10[%c0_15, %c0_16], %16 {strides = array<i32>} : memref<8x128xf32, #tpu.memory_space<vmem>>, vector<8x128xf32>,
    %c0_i32_17 = arith.constant 0 : i32
    %18 = arith.cmpi eq, %arg2, %c0_i32_17 : i32
    %19 = arith.extui %18 : i1 to i32
    %c0_i32_18 = arith.constant 0 : i32
    %20 = arith.cmpi ne, %19, %c0_i32_18 : i32
    scf.if %20 {
      %c0_19 = arith.constant 0 : index
      %c0_20 = arith.constant 0 : index
      %21 = vector.load %arg9[%c0_19, %c0_20] : memref<8x128xf32, #tpu.memory_space<vmem>>, vector<8x128xf32>
      %c0_21 = arith.constant 0 : index
      %c0_22 = arith.constant 0 : index
      %22 = vector.load %arg8[%c0_21, %c0_22] : memref<1x128xf32, #tpu.memory_space<vmem>>, vector<1x128xf32>
      %c0_23 = arith.constant 0 : index
      %c0_24 = arith.constant 0 : index
      %23 = vector.load %arg10[%c0_23, %c0_24] : memref<8x128xf32, #tpu.memory_space<vmem>>, vector<8x128xf32>
      %24 = vector.broadcast %22 : vector<1x128xf32> to vector<8x128xf32>
      %25 = arith.mulf %24, %23 : vector<8x128xf32>
      %c0_25 = arith.constant 0 : index
      %c0_26 = arith.constant 0 : index
      %26 = vector.load %arg6[%c0_25, %c0_26] : memref<1x128xf32, #tpu.memory_space<vmem>>, vector<1x128xf32>
      %27 = vector.broadcast %26 : vector<1x128xf32> to vector<8x128xf32>
      %28 = arith.addf %25, %27 : vector<8x128xf32>
      %29 = arith.addf %21, %28 : vector<8x128xf32>
      %c0_27 = arith.constant 0 : index
      %c0_28 = arith.constant 0 : index
      %30 = vector.load %arg9[%c0_27, %c0_28] : memref<8x128xf32, #tpu.memory_space<vmem>>, vector<8x128xf32>
      tpu.vector_store %arg9[%c0_27, %c0_28], %29 {strides = array<i32>} : memref<8x128xf32, #tpu.memory_space<vmem>>, vector<8x128xf32>,
    } else {
    }
    return
  }
  func.func @transform_0(%arg0: i32, %arg1: i32, %arg2: i32) -> (i32, i32) {
    %c0_i32 = arith.constant 0 : i32
    return %arg0, %arg2 : i32, i32
  }
  func.func @transform_1(%arg0: i32, %arg1: i32, %arg2: i32) -> (i32, i32) {
    %c0_i32 = arith.constant 0 : i32
    return %arg1, %arg2 : i32, i32
  }
  func.func @transform_2(%arg0: i32, %arg1: i32, %arg2: i32) -> (i32, i32) {
    %c0_i32 = arith.constant 0 : i32
    return %arg1, %arg2 : i32, i32
  }
  func.func @transform_3(%arg0: i32, %arg1: i32, %arg2: i32) -> (i32, i32) {
    %c0_i32 = arith.constant 0 : i32
    %c0_i32_0 = arith.constant 0 : i32
    return %c0_i32, %arg1 : i32, i32
  }
  func.func @transform_4(%arg0: i32, %arg1: i32, %arg2: i32) -> (i32, i32) {
    %c0_i32 = arith.constant 0 : i32
    %c0_i32_0 = arith.constant 0 : i32
    return %c0_i32, %arg2 : i32, i32
  }
  func.func @transform_5(%arg0: i32, %arg1: i32, %arg2: i32) -> (i32, i32) {
    %c0_i32 = arith.constant 0 : i32
    %c0_i32_0 = arith.constant 0 : i32
    return %c0_i32, %arg1 : i32, i32
  }
  func.func @transform_6(%arg0: i32, %arg1: i32, %arg2: i32) -> (i32, i32) {
    %c0_i32 = arith.constant 0 : i32
    return %arg0, %arg1 : i32, i32
  }
}

</mosaic_0001>

<llo_original>
// kernel: tpu_custom_call.1
$region0: #{tpu_custom_call.1}
  #allocation0 [shape = 'u32[]', space=smem, size = 0x4, offset = 0x4, fixed_abs, tag = 'smem constant byte address 0x4 - core index']
  #allocation1 [shape = 'u32[144,128]{1,0:T(1,128)}', space=vmem, size = 0x12000, scoped, tag = 'internal scratch']
  #allocation2 [shape = 'f32[8,128]{1,0:T(8,128)}', space=vmem, size = 0x1000, scoped, tag = 'scratch operand']
  %s0 = inlined_call_operand.hbm [shape: bf16[8,128], index: 0, kind: input, shape index: {}]
  %s1 = inlined_call_operand.hbm [shape: bf16[128,128], index: 1, kind: input, shape index: {}]
  %s2 = inlined_call_operand.hbm [shape: bf16[128,128], index: 2, kind: input, shape index: {}]
  %s3 = inlined_call_operand.vmem [shape: f32[1,128], index: 3, kind: input, shape index: {}]
  %s4 = inlined_call_operand.vmem [shape: f32[1,128], index: 4, kind: input, shape index: {}]
  %s5 = inlined_call_operand.vmem [shape: f32[1,128], index: 5, kind: input, shape index: {}]
  %s6 = inlined_call_operand.hbm [shape: f32[8,128], index: 6, kind: output, shape index: {}]
  %s7 = sld [smem:[#allocation0]]
  $region54: #{tpu_custom_call.1} parent=0
    _
  %s9 = ssub.s32 1, %s7
  %s10 = scalar_select 0, %s9, %s7
  $region1: #{tpu_custom_call.1} parent=0
    #allocation3 [shape = 'u8[2048]{0}', space=vmem, size = 0x800, scoped, tag = 'input window, operand 0, single buffered']
    #allocation4 [shape = 's32[1]{0}', space=sflag, size = 0x4, scoped, tag = 'scoped memory for tpu_custom_call.1']
    #allocation5 [shape = 's32[1]{0}', space=sflag, size = 0x4, scoped, tag = 'scoped memory for tpu_custom_call.1']
    #allocation6 [shape = 'u8[32768]{0}', space=vmem, size = 0x8000, scoped, tag = 'input window, operand 1, single buffered']
    #allocation7 [shape = 's32[1]{0}', space=sflag, size = 0x4, scoped, tag = 'scoped memory for tpu_custom_call.1']
    #allocation8 [shape = 'u8[32768]{0}', space=vmem, size = 0x8000, scoped, tag = 'input window, operand 2, single buffered']
    #allocation9 [shape = 'u8[4096]{0}', space=vmem, size = 0x1000, scoped, tag = 'output window, operand 0, single buffered']
    %11 = vsyncpa [#allocation4], 0
    %12 = vsyncpa [#allocation7], 0
    %13 = vsyncpa [#allocation5], 0
    // Predicated region
    $region2: #{tpu_custom_call.1} parent=1 // pred_check
      _
    $region3: #{tpu_custom_call.1} parent=1 // pred_check_branch
      %15 = sbr.rel (0) target = $region5
    $region4: #{tpu_custom_call.1} parent=1 // pred_region
      %s17 = ssub.s32 64, 64
      %18 = vsyncadd [#allocation4], %s17
      %s20 = sshll.u32 [#allocation3], 4
      %s21 = int_to_ptr.vmem [resolvable:$true] %s20
      %23 = dma.hbm_to_vmem [thread:$0]  %s0, 64, %s21, [#allocation4]
    $region5: #{tpu_custom_call.1} parent=1 // pred_fallthru
      _
    // Predicated region
    $region6: #{tpu_custom_call.1} parent=1 // pred_check
      _
    $region7: #{tpu_custom_call.1} parent=1 // pred_check_branch
      %25 = sbr.rel (0) target = $region9
    $region8: #{tpu_custom_call.1} parent=1 // pred_region
      %s27 = ssub.s32 1024, 1024
      %28 = vsyncadd [#allocation7], %s27
      %s29 = sshll.u32 [#allocation6], 4
      %s30 = int_to_ptr.vmem [resolvable:$true] %s29
      %35 = dma.hbm_to_vmem [thread:$0]  %s1, 1024, %s30, [#allocation7], 64, 64, 4
    $region9: #{tpu_custom_call.1} parent=1 // pred_fallthru
      _
    // Predicated region
    $region10: #{tpu_custom_call.1} parent=1 // pred_check
      _
    $region11: #{tpu_custom_call.1} parent=1 // pred_check_branch
      %37 = sbr.rel (0) target = $region13
    $region12: #{tpu_custom_call.1} parent=1 // pred_region
      %s39 = ssub.s32 1024, 1024
      %40 = vsyncadd [#allocation7], %s39
      %s41 = sshll.u32 [#allocation8], 4
      %s42 = int_to_ptr.vmem [resolvable:$true] %s41
      %47 = dma.hbm_to_vmem [thread:$0]  %s2, 1024, %s42, [#allocation7], 64, 64, 4
    $region13: #{tpu_custom_call.1} parent=1 // pred_fallthru
      _
    // Predicated region
    $region14: #{tpu_custom_call.1} parent=1 // pred_check
      _
    $region15: #{tpu_custom_call.1} parent=1 // pred_check_branch
      %49 = sbr.rel (0) target = $region17
    $region16: #{tpu_custom_call.1} parent=1 // pred_region
      _
    $region17: #{tpu_custom_call.1} parent=1 // pred_fallthru
      _
    // Predicated region
    $region18: #{tpu_custom_call.1} parent=1 // pred_check
      _
    $region19: #{tpu_custom_call.1} parent=1 // pred_check_branch
      %51 = sbr.rel (0) target = $region21
    $region20: #{tpu_custom_call.1} parent=1 // pred_region
      _
    $region21: #{tpu_custom_call.1} parent=1 // pred_fallthru
      _
    // Predicated region
    $region22: #{tpu_custom_call.1} parent=1 // pred_check
      _
    $region23: #{tpu_custom_call.1} parent=1 // pred_check_branch
      %53 = sbr.rel (0) target = $region25
    $region24: #{tpu_custom_call.1} parent=1 // pred_region
      _
    $region25: #{tpu_custom_call.1} parent=1 // pred_fallthru
      _
    // Predicated region
    $region26: #{tpu_custom_call.1} parent=1 // pred_check
      _
    $region27: #{tpu_custom_call.1} parent=1 // pred_check_branch
      %55 = sbr.rel (0) target = $region29
    $region28: #{tpu_custom_call.1} parent=1 // pred_region
      %56 = dma.done [#allocation4], 64
    $region29: #{tpu_custom_call.1} parent=1 // pred_fallthru
      _
    // Predicated region
    $region30: #{tpu_custom_call.1} parent=1 // pred_check
      _
    $region31: #{tpu_custom_call.1} parent=1 // pred_check_branch
      %58 = sbr.rel (0) target = $region33
    $region32: #{tpu_custom_call.1} parent=1 // pred_region
      %59 = dma.done [#allocation7], 1024
    $region33: #{tpu_custom_call.1} parent=1 // pred_fallthru
      _
    // Predicated region
    $region34: #{tpu_custom_call.1} parent=1 // pred_check
      _
    $region35: #{tpu_custom_call.1} parent=1 // pred_check_branch
      %61 = sbr.rel (0) target = $region37
    $region36: #{tpu_custom_call.1} parent=1 // pred_region
      %62 = dma.done [#allocation7], 1024
    $region37: #{tpu_custom_call.1} parent=1 // pred_fallthru
      _
    %p64 = scmp.eq.s32.totalorder 0, 0
    // Predicated region
    $region38: #{tpu_custom_call.1} parent=1 // pred_check
      %p65 = pneg %p64
    $region39: #{tpu_custom_call.1} parent=1 // pred_check_branch
      %67 = sbr.rel (%p65) target = $region41
    $region40: #{tpu_custom_call.1} parent=1 // pred_region
      %68 = vst [vmem:[#allocation9] sm:$0xff] 0.0
      %69 = vst [vmem:[#allocation2] sm:$0xff] 0.0
    $region41: #{tpu_custom_call.1} parent=1 // pred_fallthru
      _
    %v70 = vld [vmem:[#allocation3] sm:$0xf]
    %v71 = vld [vmem:[#allocation9] sm:$0xff]
    %v72 = vld [vmem:[#allocation6] sm:$0xf]
    %v73 = vld [vmem:[#allocation6 + $0x4] sm:$0xf]
    %v74 = vld [vmem:[#allocation6 + $0x8] sm:$0xf]
    %v75 = vld [vmem:[#allocation6 + $0xc] sm:$0xf]
    %v76 = vld [vmem:[#allocation6 + $0x10] sm:$0xf]
    %v77 = vld [vmem:[#allocation6 + $0x14] sm:$0xf]
    %v78 = vld [vmem:[#allocation6 + $0x18] sm:$0xf]
    %v79 = vld [vmem:[#allocation6 + $0x1c] sm:$0xf]
    %v80 = vld [vmem:[#allocation6 + $0x20] sm:$0xf]
    %v81 = vld [vmem:[#allocation6 + $0x24] sm:$0xf]
    %v82 = vld [vmem:[#allocation6 + $0x28] sm:$0xf]
    %v83 = vld [vmem:[#allocation6 + $0x2c] sm:$0xf]
    %v84 = vld [vmem:[#allocation6 + $0x30] sm:$0xf]
    %v85 = vld [vmem:[#allocation6 + $0x34] sm:$0xf]
    %v86 = vld [vmem:[#allocation6 + $0x38] sm:$0xf]
    %v87 = vld [vmem:[#allocation6 + $0x3c] sm:$0xf]
    %v104 = vunpack.c.l.b16 %v72
    %v105 = vunpack.c.l.b16 %v73
    %v106 = vunpack.c.l.b16 %v74
    %v107 = vunpack.c.l.b16 %v75
    %v108 = vunpack.c.l.b16 %v76
    %v109 = vunpack.c.l.b16 %v77
    %v110 = vunpack.c.l.b16 %v78
    %v111 = vunpack.c.l.b16 %v79
    %v112 = vunpack.c.l.b16 %v80
    %v113 = vunpack.c.l.b16 %v81
    %v114 = vunpack.c.l.b16 %v82
    %v115 = vunpack.c.l.b16 %v83
    %v116 = vunpack.c.l.b16 %v84
    %v117 = vunpack.c.l.b16 %v85
    %v118 = vunpack.c.l.b16 %v86
    %v119 = vunpack.c.l.b16 %v87
    %v120 = vpack.c.b16 %v105, %v104
    %v121 = vpack.c.b16 %v107, %v106
    %v122 = vpack.c.b16 %v109, %v108
    %v123 = vpack.c.b16 %v111, %v110
    %v124 = vpack.c.b16 %v113, %v112
    %v125 = vpack.c.b16 %v115, %v114
    %v126 = vpack.c.b16 %v117, %v116
    %v127 = vpack.c.b16 %v119, %v118
    %136 = vmatprep.subr.bf16.mxu0 0
    %137 = vmatpush1.bf16.xpose.msra.mxu0 %v127
    %138 = vmatprep.subr.bf16.mxu0 0
    %139 = vmatpush1.bf16.xpose.msra.mxu0 %v126
    %140 = vmatprep.subr.bf16.mxu0 0
    %141 = vmatpush1.bf16.xpose.msra.mxu0 %v125
    %142 = vmatprep.subr.bf16.mxu0 0
    %143 = vmatpush1.bf16.xpose.msra.mxu0 %v124
    %144 = vmatprep.subr.bf16.mxu0 0
    %145 = vmatpush1.bf16.xpose.msra.mxu0 %v123
    %146 = vmatprep.subr.bf16.mxu0 0
    %147 = vmatpush1.bf16.xpose.msra.mxu0 %v122
    %148 = vmatprep.subr.bf16.mxu0 0
    %149 = vmatpush1.bf16.xpose.msra.mxu0 %v121
    %150 = vmatprep.subr.bf16.mxu0 0
    %151 = vmatpush1.bf16.xpose.msra.mxu0 %v120
    %152 = vmatprep.subr.bf16.mxu0 0
    %153 = vmatpush2.bf16.xpose.msra.mxu0 0
    %154 = vmatprep.subr.bf16.mxu0 0
    %155 = vmatpush2.bf16.xpose.msra.mxu0 0
    %156 = vmatprep.subr.bf16.mxu0 0
    %157 = vmatpush2.bf16.xpose.msra.mxu0 0
    %158 = vmatprep.subr.bf16.mxu0 0
    %159 = vmatpush2.bf16.xpose.msra.mxu0 0
    %160 = vmatprep.subr.bf16.mxu0 0
    %161 = vmatpush2.bf16.xpose.msra.mxu0 0
    %162 = vmatprep.subr.bf16.mxu0 0
    %163 = vmatpush2.bf16.xpose.msra.mxu0 0
    %164 = vmatprep.subr.bf16.mxu0 0
    %165 = vmatpush2.bf16.xpose.msra.mxu0 0
    %166 = vmatprep.subr.bf16.mxu0 0
    %167 = vmatpush2.bf16.xpose.msra.mxu0 0
    %168 = vmatprep.mubr.bf16.mxu0 0
    %169 = vmatmul.mubr.bf16.gmra.mxu0 %v70
    %v170 = vpop.f32.mrf.mxu0
    %v171 = vadd.f32 0.0, %v170
    %v172 = vpop.f32.mrf.mxu0
    %v173 = vpop.f32.mrf.mxu0
    %v174 = vpop.f32.mrf.mxu0
    %175 = vdwg.mxu0
    %v176 = vadd.f32 %v71, %v171
    %177 = vst [vmem:[#allocation9] sm:$0xff] %v176
    %v178 = vld [vmem:[%s4] sm:$0x1]
    %v179 = vpack.c.bf16 %v178, %v178
    %v181 = vpack.i.b16 %v179, %v179
    %v183 = vlaneseq
    %v184 = vshrl.u32 %v183, 7
    %v185 = vsub.s32 0, %v184
    %v186 = vrot.slane %v181, %v185
    %v187 = vmul.bf16 %v70, %v186
    %v188 = vld [vmem:[#allocation2] sm:$0xff]
    %v189 = vld [vmem:[#allocation8] sm:$0xf]
    %v190 = vld [vmem:[#allocation8 + $0x4] sm:$0xf]
    %v191 = vld [vmem:[#allocation8 + $0x8] sm:$0xf]
    %v192 = vld [vmem:[#allocation8 + $0xc] sm:$0xf]
    %v193 = vld [vmem:[#allocation8 + $0x10] sm:$0xf]
    %v194 = vld [vmem:[#allocation8 + $0x14] sm:$0xf]
    %v195 = vld [vmem:[#allocation8 + $0x18] sm:$0xf]
    %v196 = vld [vmem:[#allocation8 + $0x1c] sm:$0xf]
    %v197 = vld [vmem:[#allocation8 + $0x20] sm:$0xf]
    %v198 = vld [vmem:[#allocation8 + $0x24] sm:$0xf]
    %v199 = vld [vmem:[#allocation8 + $0x28] sm:$0xf]
    %v200 = vld [vmem:[#allocation8 + $0x2c] sm:$0xf]
    %v201 = vld [vmem:[#allocation8 + $0x30] sm:$0xf]
    %v202 = vld [vmem:[#allocation8 + $0x34] sm:$0xf]
    %v203 = vld [vmem:[#allocation8 + $0x38] sm:$0xf]
    %v204 = vld [vmem:[#allocation8 + $0x3c] sm:$0xf]
    %v221 = vunpack.c.l.b16 %v189
    %v222 = vunpack.c.l.b16 %v190
    %v223 = vunpack.c.l.b16 %v191
    %v224 = vunpack.c.l.b16 %v192
    %v225 = vunpack.c.l.b16 %v193
    %v226 = vunpack.c.l.b16 %v194
    %v227 = vunpack.c.l.b16 %v195
    %v228 = vunpack.c.l.b16 %v196
    %v229 = vunpack.c.l.b16 %v197
    %v230 = vunpack.c.l.b16 %v198
    %v231 = vunpack.c.l.b16 %v199
    %v232 = vunpack.c.l.b16 %v200
    %v233 = vunpack.c.l.b16 %v201
    %v234 = vunpack.c.l.b16 %v202
    %v235 = vunpack.c.l.b16 %v203
    %v236 = vunpack.c.l.b16 %v204
    %v237 = vpack.c.b16 %v222, %v221
    %v238 = vpack.c.b16 %v224, %v223
    %v239 = vpack.c.b16 %v226, %v225
    %v240 = vpack.c.b16 %v228, %v227
    %v241 = vpack.c.b16 %v230, %v229
    %v242 = vpack.c.b16 %v232, %v231
    %v243 = vpack.c.b16 %v234, %v233
    %v244 = vpack.c.b16 %v236, %v235
    %253 = vmatprep.subr.bf16.mxu0 0
    %254 = vmatpush1.bf16.xpose.msra.mxu0 %v244
    %255 = vmatprep.subr.bf16.mxu0 0
    %256 = vmatpush1.bf16.xpose.msra.mxu0 %v243
    %257 = vmatprep.subr.bf16.mxu0 0
    %258 = vmatpush1.bf16.xpose.msra.mxu0 %v242
    %259 = vmatprep.subr.bf16.mxu0 0
    %260 = vmatpush1.bf16.xpose.msra.mxu0 %v241
    %261 = vmatprep.subr.bf16.mxu0 0
    %262 = vmatpush1.bf16.xpose.msra.mxu0 %v240
    %263 = vmatprep.subr.bf16.mxu0 0
    %264 = vmatpush1.bf16.xpose.msra.mxu0 %v239
    %265 = vmatprep.subr.bf16.mxu0 0
    %266 = vmatpush1.bf16.xpose.msra.mxu0 %v238
    %267 = vmatprep.subr.bf16.mxu0 0
    %268 = vmatpush1.bf16.xpose.msra.mxu0 %v237
    %269 = vmatprep.subr.bf16.mxu0 0
    %270 = vmatpush2.bf16.xpose.msra.mxu0 0
    %271 = vmatprep.subr.bf16.mxu0 0
    %272 = vmatpush2.bf16.xpose.msra.mxu0 0
    %273 = vmatprep.subr.bf16.mxu0 0
    %274 = vmatpush2.bf16.xpose.msra.mxu0 0
    %275 = vmatprep.subr.bf16.mxu0 0
    %276 = vmatpush2.bf16.xpose.msra.mxu0 0
    %277 = vmatprep.subr.bf16.mxu0 0
    %278 = vmatpush2.bf16.xpose.msra.mxu0 0
    %279 = vmatprep.subr.bf16.mxu0 0
    %280 = vmatpush2.bf16.xpose.msra.mxu0 0
    %281 = vmatprep.subr.bf16.mxu0 0
    %282 = vmatpush2.bf16.xpose.msra.mxu0 0
    %283 = vmatprep.subr.bf16.mxu0 0
    %284 = vmatpush2.bf16.xpose.msra.mxu0 0
    %285 = vmatprep.mubr.bf16.mxu0 0
    %286 = vmatmul.mubr.bf16.gmra.mxu0 %v187
    %v287 = vpop.f32.mrf.mxu0
    %v288 = vadd.f32 0.0, %v287
    %v289 = vpop.f32.mrf.mxu0
    %v290 = vpop.f32.mrf.mxu0
    %v291 = vpop.f32.mrf.mxu0
    %292 = vdwg.mxu0
    %v293 = vadd.f32 %v188, %v288
    %294 = vst [vmem:[#allocation2] sm:$0xff] %v293
    // Predicated region
    $region42: #{tpu_custom_call.1} parent=1 // pred_check
      %p295 = pneg %p64
    $region43: #{tpu_custom_call.1} parent=1 // pred_check_branch
      %297 = sbr.rel (%p295) target = $region45
    $region44: #{tpu_custom_call.1} parent=1 // pred_region
      %v298 = vld [vmem:[#allocation9] sm:$0xff]
      %v299 = vld [vmem:[%s5] sm:$0x1]
      %v300 = vld [vmem:[#allocation2] sm:$0xff]
      %v302 = vlaneseq
      %v303 = vshrl.u32 %v302, 7
      %v304 = vsub.s32 0, %v303
      %v305 = vrot.slane %v299, %v304
      %v307 = vmul.f32 %v305, %v300
      %v308 = vld [vmem:[%s3] sm:$0x1]
      %v310 = vlaneseq
      %v311 = vshrl.u32 %v310, 7
      %v312 = vsub.s32 0, %v311
      %v313 = vrot.slane %v308, %v312
      %v315 = vadd.f32 %v307, %v313
      %v316 = vadd.f32 %v298, %v315
      %317 = vst [vmem:[#allocation9] sm:$0xff] %v316
    $region45: #{tpu_custom_call.1} parent=1 // pred_fallthru
      _
    // Predicated region
    $region46: #{tpu_custom_call.1} parent=1 // pred_check
      _
    $region47: #{tpu_custom_call.1} parent=1 // pred_check_branch
      %319 = sbr.rel (0) target = $region49
    $region48: #{tpu_custom_call.1} parent=1 // pred_region
      %s321 = ssub.s32 128, 128
      %322 = vsyncadd [#allocation5], %s321
      %s324 = sshll.u32 [#allocation9], 4
      %s325 = int_to_ptr.vmem [resolvable:$true] %s324
      %327 = dma.vmem_to_hbm [thread:$0]  %s325, 128, %s6, [#allocation5]
    $region49: #{tpu_custom_call.1} parent=1 // pred_fallthru
      _
    // Predicated region
    $region50: #{tpu_custom_call.1} parent=1 // pred_check
      _
    $region51: #{tpu_custom_call.1} parent=1 // pred_check_branch
      %329 = sbr.rel (0) target = $region53
    $region52: #{tpu_custom_call.1} parent=1 // pred_region
      %330 = dma.done [#allocation5], 128
    $region53: #{tpu_custom_call.1} parent=1 // pred_fallthru
      _
    %331 = vsyncpa [#allocation4], 1
    %332 = vsyncpa [#allocation7], 1
    %333 = vsyncpa [#allocation5], 1

</llo_original>
